<compile_context>
chip_gen: v7x
topology: tpu7x:2x2x1
jax: 0.10.0
libtpu: 0.0.40
codegen_flags: <defaults>
</compile_context>

<pallas_src>
import jax
import jax.numpy as jnp
from jax.experimental import pallas as pl
from jax.experimental.pallas import tpu as pltpu


def lau_kernel(a_ref, b_ref, x_ref, o_ref):
    # a_ref / b_ref: (1,) f32 scalars prefetched into SMEM before the grid runs.
    a = a_ref[0]
    b = b_ref[0]
    # Compute in f32 regardless of the I/O dtype.
    x = x_ref[...].astype(jnp.float32)
    # sigmoid(b*x) via tanh: sigmoid(t) = 0.5 * tanh(t/2) + 0.5  -> one EUP op instead
    # of exp + reciprocal; log1p is the second (and last) EUP op per element.
    s = 0.5 * jnp.tanh(0.5 * b * x) + 0.5
    o_ref[...] = (x * jnp.log1p(a * s)).astype(o_ref.dtype)
    # NOTE: if the learned parameter a <= -1, log1p can produce NaN — identical to the
    # PyTorch reference semantics, not a kernel bug.  The ragged last block may compute
    # garbage/NaN on its overhang rows, but those writes are masked off by Pallas.


def _block_bytes_and_vmem_limit():
    """Generation-aware (target_block_bytes, vmem_limit_bytes)."""
    try:
        info = pltpu.get_tpu_info()
        vmem = getattr(info, "vmem_capacity_bytes", None)
    except Exception:  # query unavailable (e.g. interpret mode) -> conservative default
        vmem = None
    if vmem is not None and vmem <= 64 * 1024 * 1024:
        # v7x-class: very high HBM BW, smaller physical VMEM -> big blocks, explicit limit.
        return 6 * 1024 * 1024, 44 * 1024 * 1024
    if vmem is not None:
        # v5e / v6e-class (128 MiB physical VMEM): 4 MiB blocks, limit well under physical.
        return 4 * 1024 * 1024, 28 * 1024 * 1024
    # Unknown hardware: 2 MiB blocks fit every generation's default scoped VMEM.
    return 2 * 1024 * 1024, 24 * 1024 * 1024


def _lau_elementwise_f32(x_f32, a, b):
    s = 0.5 * jnp.tanh(0.5 * b * x_f32) + 0.5
    return x_f32 * jnp.log1p(a * s)


def lau_forward(x, a, b):
    orig_shape = x.shape
    orig_dtype = x.dtype
    total = x.size
    itemsize = jnp.dtype(orig_dtype).itemsize

    a_arr = jnp.asarray(a, dtype=jnp.float32).reshape(1)
    b_arr = jnp.asarray(b, dtype=jnp.float32).reshape(1)
    x_flat = x.reshape(-1)

    # Lane width: largest of {512, 256, 128} dividing total (copy-free reshape).
    # Otherwise: 512-wide bulk through the kernel + a tiny (<512 elem) jnp tail.
    lanes = None
    for cand in (512, 256, 128):
        if total % cand == 0:
            lanes = cand
            break
    if lanes is None:
        lanes = 512
    bulk = (total // lanes) * lanes
    tail = total - bulk

    out_bulk = None
    if bulk:
        rows = bulk // lanes
        # Sublane packing: 8 rows/f32, 16 rows/bf16, 32 rows/int8 per vreg tile.
        row_align = max(8, 32 // itemsize)
        target_block_bytes, vmem_limit = _block_bytes_and_vmem_limit()

        if rows <= row_align:
            # Tiny input: single full-extent block (always a legal block shape).
            blk = rows
        else:
            blk_max = max(
                row_align,
                (target_block_bytes // (lanes * itemsize)) // row_align * row_align,
            )
            g = pl.cdiv(rows, blk_max)
            # Keep the parallel grid >= 2 and even so v7x's two TensorCores split evenly.
            g = max(g, 2)
            if g % 2:
                g += 1
            blk = min(rows, pl.cdiv(pl.cdiv(rows, g), row_align) * row_align)
        grid = pl.cdiv(rows, blk)  # ragged last block handled by Pallas edge masking

        x2d = (x_flat if tail == 0 else x_flat[:bulk]).reshape(rows, lanes)

        out2d = pl.pallas_call(
            lau_kernel,
            out_shape=jax.ShapeDtypeStruct((rows, lanes), orig_dtype),
            grid_spec=pltpu.PrefetchScalarGridSpec(
                num_scalar_prefetch=2,  # a, b land in SMEM once, before the grid runs
                grid=(grid,),
                in_specs=[pl.BlockSpec((blk, lanes), lambda i, a_s, b_s: (i, 0))],
                out_specs=pl.BlockSpec((blk, lanes), lambda i, a_s, b_s: (i, 0)),
            ),
            compiler_params=pltpu.CompilerParams(
                dimension_semantics=("parallel",),
                vmem_limit_bytes=vmem_limit,
            ),
            cost_estimate=pl.CostEstimate(
                flops=6 * bulk,
                transcendentals=2 * bulk,  # tanh + log1p per element
                bytes_accessed=2 * bulk * itemsize,
            ),
        )(a_arr, b_arr, x2d)
        out_bulk = out2d.reshape(-1)

    if tail:
        # <512 leftover elements: plain jnp, negligible cost, avoids pad/slice traffic.
        xt = x_flat[bulk:].astype(jnp.float32)
        out_tail = _lau_elementwise_f32(xt, a_arr[0], b_arr[0]).astype(orig_dtype)
        out_flat = jnp.concatenate([out_bulk, out_tail]) if bulk else out_tail
    else:
        out_flat = out_bulk

    return out_flat.reshape(orig_shape)


def lau_reference(x, a, b):
    s = jax.nn.sigmoid(b * x)
    return x * jnp.log1p(a * s)


if __name__ == "__main__":
    key = jax.random.PRNGKey(0)

    # Deterministic parameters matching nn.Parameter(torch.ones(1)).
    a = jnp.ones((1,), dtype=jnp.float32)
    b = jnp.ones((1,), dtype=jnp.float32)

    # Primary check: f32 NCHW input, exact-fit lane-dense slab (copy-free path).
    B, C, H, W = 2, 4, 16, 16
    x = jax.random.normal(key, (B, C, H, W), dtype=jnp.float32)
    y = jax.block_until_ready(lau_forward(x, a, b))
    y_ref = lau_reference(x, a[0], b[0])
    assert y.shape == x.shape and y.dtype == x.dtype
    assert jnp.allclose(y, y_ref, atol=1e-5, rtol=1e-5), "f32 mismatch vs reference"

    # Ragged-row check: 36 rows of 512 -> grid of 2 with a masked last block.
    x1 = jax.random.normal(jax.random.PRNGKey(2), (4, 8, 24, 24), dtype=jnp.float32)
    y1 = jax.block_until_ready(lau_forward(x1, a, b))
    y1_ref = lau_reference(x1, a[0], b[0])
    assert y1.shape == x1.shape and y1.dtype == x1.dtype
    assert jnp.allclose(y1, y1_ref, atol=1e-5, rtol=1e-5), "ragged-row mismatch vs reference"

    # bf16 + non-multiple-of-128 size: exercises native-dtype I/O and the bulk+tail path.
    x2 = jax.random.normal(jax.random.PRNGKey(1), (2, 3, 17, 19), dtype=jnp.bfloat16)
    y2 = jax.block_until_ready(lau_forward(x2, a, b))
    y2_ref = lau_reference(x2.astype(jnp.float32), a[0], b[0])
    assert y2.shape == x2.shape and y2.dtype == x2.dtype
    assert jnp.allclose(y2.astype(jnp.float32), y2_ref, atol=2e-2, rtol=2e-2), \
        "bf16 mismatch vs reference"

    print("KERNEL_OK")
</pallas_src>

<mosaic_0001>
module attributes {stable_mosaic.version = 11 : i64} {
  func.func @lau_kernel(%arg0: i32, %arg1: memref<1xf32, #tpu.memory_space<smem>>, %arg2: memref<1xf32, #tpu.memory_space<smem>>, %arg3: memref<4x512xf32, #tpu.memory_space<vmem>>, %arg4: memref<4x512xf32, #tpu.memory_space<vmem>>) attributes {dimension_semantics = [#tpu.dimension_semantics<parallel>], iteration_bounds = array<i64: 1>, scalar_prefetch = 2 : i64, scratch_operands = 0 : i64, tpu.core_type = #tpu.core_type<tc>, window_params = [{transform_indices = @transform_0, window_bounds = array<i64: 4, 512>}, {transform_indices = @transform_1, window_bounds = array<i64: 4, 512>}]} {
    %c0 = arith.constant 0 : index
    %0 = memref.load %arg1[%c0] : memref<1xf32, #tpu.memory_space<smem>>
    %c0_0 = arith.constant 0 : index
    %1 = memref.load %arg2[%c0_0] : memref<1xf32, #tpu.memory_space<smem>>
    %c0_1 = arith.constant 0 : index
    %c0_2 = arith.constant 0 : index
    %2 = vector.load %arg3[%c0_1, %c0_2] : memref<4x512xf32, #tpu.memory_space<vmem>>, vector<4x512xf32>
    %cst = arith.constant 5.000000e-01 : f32
    %3 = arith.mulf %cst, %1 : f32
    %4 = vector.broadcast %3 : f32 to vector<4x512xf32>
    %5 = arith.mulf %4, %2 : vector<4x512xf32>
    %6 = math.tanh %5 : vector<4x512xf32>
    %cst_3 = arith.constant 5.000000e-01 : f32
    %7 = vector.broadcast %cst_3 : f32 to vector<4x512xf32>
    %8 = arith.mulf %7, %6 : vector<4x512xf32>
    %cst_4 = arith.constant 5.000000e-01 : f32
    %9 = vector.broadcast %cst_4 : f32 to vector<4x512xf32>
    %10 = arith.addf %8, %9 : vector<4x512xf32>
    %11 = vector.broadcast %0 : f32 to vector<4x512xf32>
    %12 = arith.mulf %11, %10 : vector<4x512xf32>
    %13 = math.log1p %12 : vector<4x512xf32>
    %14 = arith.mulf %2, %13 : vector<4x512xf32>
    %c0_5 = arith.constant 0 : index
    %c0_6 = arith.constant 0 : index
    %15 = vector.load %arg4[%c0_5, %c0_6] : memref<4x512xf32, #tpu.memory_space<vmem>>, vector<4x512xf32>
    tpu.vector_store %arg4[%c0_5, %c0_6], %14 {strides = array<i32>} : memref<4x512xf32, #tpu.memory_space<vmem>>, vector<4x512xf32>,
    return
  }
  func.func @transform_0(%arg0: i32, %arg1: memref<1xf32, #tpu.memory_space<smem>>, %arg2: memref<1xf32, #tpu.memory_space<smem>>) -> (i32, i32) {
    %c0_i32 = arith.constant 0 : i32
    %c0_i32_0 = arith.constant 0 : i32
    return %arg0, %c0_i32 : i32, i32
  }
  func.func @transform_1(%arg0: i32, %arg1: memref<1xf32, #tpu.memory_space<smem>>, %arg2: memref<1xf32, #tpu.memory_space<smem>>) -> (i32, i32) {
    %c0_i32 = arith.constant 0 : i32
    %c0_i32_0 = arith.constant 0 : i32
    return %arg0, %c0_i32 : i32, i32
  }
}

</mosaic_0001>

<llo_original>
// kernel: tpu_custom_call.1
$region0: #{tpu_custom_call.1}
  #allocation0 [shape = 'u32[]', space=smem, size = 0x4, offset = 0x4, fixed_abs, tag = 'smem constant byte address 0x4 - core index']
  #allocation1 [shape = 'u32[144,128]{1,0:T(1,128)}', space=vmem, size = 0x12000, scoped, tag = 'internal scratch']
  #allocation2 [shape = 's32[1]{0}', space=sflag, size = 0x4, scoped, tag = 'scoped memory for tpu_custom_call.1']
  #allocation3 [shape = 'f32[1]{0:T(128)S(6)}', space=smem, size = 0x200, scoped, tag = 'prefetched SMEM operand 0']
  #allocation4 [shape = 'f32[1]{0:T(128)S(6)}', space=smem, size = 0x200, scoped, tag = 'prefetched SMEM operand 1']
  %s0 = inlined_call_operand.<no memory space> [shape: f32[1], index: 0, kind: input, shape index: {}]
  %s1 = inlined_call_operand.<no memory space> [shape: f32[1], index: 1, kind: input, shape index: {}]
  %s2 = inlined_call_operand.hbm [shape: f32[4,512], index: 2, kind: input, shape index: {}]
  %s3 = inlined_call_operand.hbm [shape: f32[4,512], index: 3, kind: output, shape index: {}]
  %s4 = sld [smem:[#allocation0]]
  $region18: #{tpu_custom_call.1} parent=0
    _
  %s6 = ssub.s32 1, %s4
  %s7 = scalar_select 0, %s6, %s4
  %8 = sst [smem:[#allocation3]] %s0
  %9 = sst [smem:[#allocation4]] %s1
  $region1: #{tpu_custom_call.1} parent=0
    #allocation5 [shape = 'u8[8192]{0}', space=vmem, size = 0x2000, scoped, tag = 'input window, operand 2, single buffered']
    #allocation6 [shape = 's32[1]{0}', space=sflag, size = 0x4, scoped, tag = 'scoped memory for tpu_custom_call.1']
    #allocation7 [shape = 's32[1]{0}', space=sflag, size = 0x4, scoped, tag = 'scoped memory for tpu_custom_call.1']
    #allocation8 [shape = 'u8[8192]{0}', space=vmem, size = 0x2000, scoped, tag = 'output window, operand 0, single buffered']
    %10 = vsyncpa [#allocation6], 0
    %11 = vsyncpa [#allocation7], 0
    // Predicated region
    $region2: #{tpu_custom_call.1} parent=1 // pred_check
      _
    $region3: #{tpu_custom_call.1} parent=1 // pred_check_branch
      %13 = sbr.rel (0) target = $region5
    $region4: #{tpu_custom_call.1} parent=1 // pred_region
      %s15 = ssub.s32 256, 256
      %16 = vsyncadd [#allocation6], %s15
      %s18 = sshll.u32 [#allocation5], 4
      %s19 = int_to_ptr.vmem [resolvable:$true] %s18
      %21 = dma.hbm_to_vmem [thread:$0]  %s2, 256, %s19, [#allocation6]
    $region5: #{tpu_custom_call.1} parent=1 // pred_fallthru
      _
    // Predicated region
    $region6: #{tpu_custom_call.1} parent=1 // pred_check
      _
    $region7: #{tpu_custom_call.1} parent=1 // pred_check_branch
      %23 = sbr.rel (0) target = $region9
    $region8: #{tpu_custom_call.1} parent=1 // pred_region
      %24 = dma.done [#allocation6], 256
    $region9: #{tpu_custom_call.1} parent=1 // pred_fallthru
      _
    %s25 = sld [smem:[#allocation3]]
    %s26 = sld [smem:[#allocation4]]
    %v27 = vld [vmem:[#allocation5] sm:$0xff]
    %v28 = vld [vmem:[#allocation5 + $0x8] sm:$0xff]
    %s29 = smul.f32 %s26, 0.5
    %v30 = vstv %s29
    %v31 = vmul.f32 %v30, %v27
    %v32 = vmul.f32 %v30, %v28
    %v33 = vtanh.pop %v31
    %v34 = vtanh.pop %v32
    %v35 = vmul.f32 %v33, 0.5
    %v36 = vmul.f32 %v34, 0.5
    %v37 = vadd.f32 %v35, 0.5
    %v38 = vadd.f32 %v36, 0.5
    %v39 = vstv %s25
    %v40 = vmul.f32 %v39, %v37
    %v41 = vmul.f32 %v39, %v38
    %v42 = vadd.f32 %v40, 1.0
    %v43 = vlog2.pop %v42
    %v44 = vmul.f32 %v43, 0.6931472
    %v45 = vmul.f32 -0.5, %v40
    %v46 = vadd.f32 %v45, 1.0
    %v47 = vmul.f32 %v46, %v40
    %v48 = vand.u32 2147483647, %v40
    %vm49 = vcmp.lt.f32.partialorder %v48, 0.0004427343
    %v50 = vsel %vm49, %v47, %v44
    %v51 = vadd.f32 %v41, 1.0
    %v52 = vlog2.pop %v51
    %v53 = vmul.f32 %v52, 0.6931472
    %v54 = vmul.f32 -0.5, %v41
    %v55 = vadd.f32 %v54, 1.0
    %v56 = vmul.f32 %v55, %v41
    %v57 = vand.u32 2147483647, %v41
    %vm58 = vcmp.lt.f32.partialorder %v57, 0.0004427343
    %v59 = vsel %vm58, %v56, %v53
    %v60 = vmul.f32 %v27, %v50
    %v61 = vmul.f32 %v28, %v59
    %62 = vst [vmem:[#allocation8] sm:$0xff] %v60
    %63 = vst [vmem:[#allocation8 + $0x8] sm:$0xff] %v61
    // Predicated region
    $region10: #{tpu_custom_call.1} parent=1 // pred_check
      _
    $region11: #{tpu_custom_call.1} parent=1 // pred_check_branch
      %65 = sbr.rel (0) target = $region13
    $region12: #{tpu_custom_call.1} parent=1 // pred_region
      %s67 = ssub.s32 256, 256
      %68 = vsyncadd [#allocation7], %s67
      %s70 = sshll.u32 [#allocation8], 4
      %s71 = int_to_ptr.vmem [resolvable:$true] %s70
      %73 = dma.vmem_to_hbm [thread:$0]  %s71, 256, %s3, [#allocation7]
    $region13: #{tpu_custom_call.1} parent=1 // pred_fallthru
      _
    // Predicated region
    $region14: #{tpu_custom_call.1} parent=1 // pred_check
      _
    $region15: #{tpu_custom_call.1} parent=1 // pred_check_branch
      %75 = sbr.rel (0) target = $region17
    $region16: #{tpu_custom_call.1} parent=1 // pred_region
      %76 = dma.done [#allocation7], 256
    $region17: #{tpu_custom_call.1} parent=1 // pred_fallthru
      _
    %77 = vsyncpa [#allocation6], 1
    %78 = vsyncpa [#allocation7], 1

</llo_original>
